<compile_context>
chip_gen: v6e
topology: v6e:2x2x1
jax: 0.10.0
libtpu: 0.0.40
codegen_flags: <defaults>
</compile_context>

<pallas_src>
import functools

import jax
import jax.numpy as jnp
import numpy as np
from jax import lax
from jax.experimental import pallas as pl
from jax.experimental.pallas import tpu as pltpu

_EPS = 1e-5


# ----------------------------------------------------------------------------
# Pallas kernel
# ----------------------------------------------------------------------------
def _aconv_kernel(x_ref, s_ref, b_ref, o_ref, col_ref, *, cin, w_in):
    # x_ref  : (1, H/2, 2*W*Cin)  f32   rows parity-packed: [x[2m] | x[2m+1]]
    # s_ref  : (3*(W-1)*Cin, Wo*Cout) bf16  conv taps + stride-2 + W-pad + BN folded
    # b_ref  : (1, Wo*Cout)       f32   BN bias tiled over Wo
    # o_ref  : (1, Ho, Wo*Cout)   f32
    # col_ref: (Ho, 3*(W-1)*Cin)  f32   VMEM scratch, per-output-row "im2col" matrix
    half = w_in * cin              # lanes per input row      (W*Cin)
    wc = (w_in - 1) * cin          # lanes per pooled row     ((W-1)*Cin)

    xv = x_ref[0].astype(jnp.float32)     # (H/2, 2*W*Cin)
    xe = xv[:, :half]                     # input rows 0, 2, 4, ...
    xo = xv[:, half:]                     # input rows 1, 3, 5, ...
    hh = xe.shape[0]                      # H/2 == number of conv output rows

    # ---- AvgPool2d(kernel=2, stride=1), computed per row parity (VPU only) ----
    rs_e = xe + xo                        # x[2m]   + x[2m+1]  -> pooled rows 2m
    rs_o = xo[:hh - 1, :] + xe[1:, :]     # x[2m+1] + x[2m+2]  -> pooled rows 2m+1
    pe = 0.25 * (rs_e[:, :wc] + rs_e[:, cin:])   # p[2m]    : (hh,   wc)
    po = 0.25 * (rs_o[:, :wc] + rs_o[:, cin:])   # p[2m+1]  : (hh-1, wc)

    # ---- per-output-row matrix: col[a] = [ p[2a-1] | p[2a] | p[2a+1] ] --------
    # The two zero rows realize the conv's zero padding along H (padding along W
    # and the 3 dx taps / stride 2 are already folded into s_ref host-side).
    zrow = jnp.zeros((1, wc), jnp.float32)
    col_ref[0:1, 0:wc] = zrow
    col_ref[1:hh, 0:wc] = po
    col_ref[:, wc:2 * wc] = pe
    col_ref[0:hh - 1, 2 * wc:3 * wc] = po
    col_ref[hh - 1:hh, 2 * wc:3 * wc] = zrow

    # ---- single MXU matmul (bf16 operands, f32 accumulation) + bias + ReLU ----
    acc = jnp.dot(col_ref[...].astype(jnp.bfloat16), s_ref[...],
                  preferred_element_type=jnp.float32)          # (hh, Wo*Cout)
    o_ref[0] = jnp.maximum(acc + b_ref[...], 0.0)


# ----------------------------------------------------------------------------
# Wrapper
# ----------------------------------------------------------------------------
def aconv_pallas(x_nchw, s_mat, bias_row, *, cin, cout):
    B, C, H, W = x_nchw.shape
    assert C == cin, "channel mismatch"
    assert H % 2 == 0 and W % 2 == 0, "kernel assumes even spatial dims"
    Ho, Wo = H // 2, W // 2
    assert s_mat.shape == (3 * (W - 1) * cin, Wo * cout)
    assert bias_row.shape == (1, Wo * cout)

    # NCHW -> NHWC -> (B, H/2, 2*W*Cin): rows parity-packed, (W, Cin) lane-flattened.
    x_rows = jnp.transpose(x_nchw, (0, 2, 3, 1)).reshape(B, H // 2, 2 * W * cin)
    x_rows = x_rows.astype(jnp.float32)

    kernel = functools.partial(_aconv_kernel, cin=cin, w_in=W)

    out = pl.pallas_call(
        kernel,
        out_shape=jax.ShapeDtypeStruct((B, Ho, Wo * cout), jnp.float32),
        grid=(B,),
        in_specs=[
            pl.BlockSpec((1, H // 2, 2 * W * cin), lambda b: (b, 0, 0)),
            pl.BlockSpec(s_mat.shape, lambda b: (0, 0)),      # weights stay resident
            pl.BlockSpec(bias_row.shape, lambda b: (0, 0)),
        ],
        out_specs=pl.BlockSpec((1, Ho, Wo * cout), lambda b: (b, 0, 0)),
        scratch_shapes=[pltpu.VMEM((Ho, 3 * (W - 1) * cin), jnp.float32)],
        compiler_params=pltpu.CompilerParams(
            dimension_semantics=("parallel",)),
    )(x_rows, s_mat, bias_row)

    return jnp.transpose(out.reshape(B, Ho, Wo, cout), (0, 3, 1, 2))


# ----------------------------------------------------------------------------
# Deterministic parameter init (mirrors AConv's ConvLayer) + host-side folding
# ----------------------------------------------------------------------------
def init_raw_params(key, in_channels, out_channels):
    kw, kg, kb, km, kv = jax.random.split(key, 5)
    w = 0.3 * jax.random.normal(kw, (out_channels, in_channels, 3, 3),
                                dtype=jnp.float32)            # Conv2d OIHW, bias=False
    gamma = jax.random.uniform(kg, (out_channels,), minval=0.5, maxval=1.5)
    beta = 0.1 * jax.random.normal(kb, (out_channels,))
    mean = 0.1 * jax.random.normal(km, (out_channels,))
    var = jax.random.uniform(kv, (out_channels,), minval=0.5, maxval=1.5)
    return dict(w=w, bn=(gamma, beta, mean, var))


def fold_params(raw, *, W):
    """Fold BN into the conv and absorb the 3 dx taps, the stride-2 column access
    and the W-axis zero padding into one dense (3*(W-1)*Cin, Wo*Cout) matrix."""
    w = raw['w']                                   # (Cout, Cin, 3, 3)  OIHW
    gamma, beta, mean, var = raw['bn']
    s = gamma / jnp.sqrt(var + _EPS)
    kf = jnp.transpose(w, (2, 3, 1, 0)) * s        # (3, 3, Cin, Cout), BN folded
    bias = beta - mean * s                         # (Cout,)

    cout, cin = w.shape[0], w.shape[1]
    wo = W // 2
    wp = W - 1                                     # pooled width (avgpool k=2, s=1)
    kf_np = np.asarray(kf, np.float32)
    S = np.zeros((3, wp * cin, wo * cout), np.float32)
    for dy in range(3):
        for b in range(wo):
            for dx in range(3):
                j = 2 * b + dx - 1                 # pooled column read by (b, dx)
                if 0 <= j < wp:                    # j outside range = conv zero pad
                    S[dy, j * cin:(j + 1) * cin,
                      b * cout:(b + 1) * cout] = kf_np[dy, dx]
    s_mat = jnp.asarray(S.reshape(3 * wp * cin, wo * cout), jnp.bfloat16)
    bias_row = jnp.tile(bias, wo).reshape(1, wo * cout).astype(jnp.float32)
    return s_mat, bias_row


# ----------------------------------------------------------------------------
# Pure-JAX reference (NCHW, matches the PyTorch AConv forward, inference BN)
# ----------------------------------------------------------------------------
def ref_forward(x, raw):
    # AvgPool2d(kernel_size=2, stride=1)
    p = 0.25 * (x[:, :, :-1, :-1] + x[:, :, 1:, :-1]
                + x[:, :, :-1, 1:] + x[:, :, 1:, 1:])
    # Conv2d(k=3, stride=2, padding=1, bias=False)
    y = lax.conv_general_dilated(p, raw['w'], (2, 2), [(1, 1), (1, 1)],
                                 dimension_numbers=('NCHW', 'OIHW', 'NCHW'))
    gamma, beta, mean, var = raw['bn']
    sh = lambda a: a[None, :, None, None]
    y = (y - sh(mean)) / jnp.sqrt(sh(var) + _EPS) * sh(gamma) + sh(beta)
    return jnp.maximum(y, 0.0)                     # ReLU (ConvLayer default act)


# ----------------------------------------------------------------------------
if __name__ == "__main__":
    key = jax.random.PRNGKey(0)
    kx, kp = jax.random.split(key)

    B, CIN, COUT, H, W = 2, 4, 8, 16, 16
    x = jax.random.normal(kx, (B, CIN, H, W), dtype=jnp.float32)

    raw = init_raw_params(kp, CIN, COUT)
    s_mat, bias_row = fold_params(raw, W=W)

    out = aconv_pallas(x, s_mat, bias_row, cin=CIN, cout=COUT)
    out = jax.block_until_ready(out)

    ref = ref_forward(x, raw)
    # bf16 MXU operands (f32 accumulation) -> relaxed tolerance vs the f32 reference.
    np.testing.assert_allclose(np.asarray(out), np.asarray(ref),
                               atol=5e-2, rtol=5e-2)
    print("KERNEL_OK")
</pallas_src>

<mosaic_0001>
module attributes {stable_mosaic.version = 11 : i64} {
  func.func @_aconv_kernel(%arg0: i32, %arg1: memref<1x8x128xf32, #tpu.memory_space<vmem>>, %arg2: memref<180x64xbf16, #tpu.memory_space<vmem>>, %arg3: memref<1x64xf32, #tpu.memory_space<vmem>>, %arg4: memref<1x8x64xf32, #tpu.memory_space<vmem>>, %arg5: memref<8x180xf32, #tpu.memory_space<vmem>>) attributes {dimension_semantics = [#tpu.dimension_semantics<parallel>], iteration_bounds = array<i64: 2>, scalar_prefetch = 0 : i64, scratch_operands = 1 : i64, tpu.core_type = #tpu.core_type<tc>, window_params = [{transform_indices = @transform_0, window_bounds = array<i64: 1, 8, 128>}, {pipeline_mode = #tpu.pipeline_mode<synchronous>, transform_indices = @transform_1, window_bounds = array<i64: 180, 64>}, {pipeline_mode = #tpu.pipeline_mode<synchronous>, transform_indices = @transform_2, window_bounds = array<i64: 1, 64>}, {transform_indices = @transform_3, window_bounds = array<i64: 1, 8, 64>}]} {
    %c0 = arith.constant 0 : index
    %c0_0 = arith.constant 0 : index
    %c0_1 = arith.constant 0 : index
    %0 = vector.load %arg1[%c0, %c0_0, %c0_1] : memref<1x8x128xf32, #tpu.memory_space<vmem>>, vector<1x8x128xf32>
    %1 = vector.shape_cast %0 : vector<1x8x128xf32> to vector<8x128xf32>
    %2 = vector.extract_strided_slice %1 {offsets = [0, 0], sizes = [8, 64], strides = [1, 1]} : vector<8x128xf32> to vector<8x64xf32>
    %3 = vector.extract_strided_slice %1 {offsets = [0, 64], sizes = [8, 64], strides = [1, 1]} : vector<8x128xf32> to vector<8x64xf32>
    %4 = arith.addf %2, %3 : vector<8x64xf32>
    %5 = vector.extract_strided_slice %3 {offsets = [0, 0], sizes = [7, 64], strides = [1, 1]} : vector<8x64xf32> to vector<7x64xf32>
    %6 = vector.extract_strided_slice %2 {offsets = [1, 0], sizes = [7, 64], strides = [1, 1]} : vector<8x64xf32> to vector<7x64xf32>
    %7 = arith.addf %5, %6 : vector<7x64xf32>
    %8 = vector.extract_strided_slice %4 {offsets = [0, 0], sizes = [8, 60], strides = [1, 1]} : vector<8x64xf32> to vector<8x60xf32>
    %9 = vector.extract_strided_slice %4 {offsets = [0, 4], sizes = [8, 60], strides = [1, 1]} : vector<8x64xf32> to vector<8x60xf32>
    %10 = arith.addf %8, %9 : vector<8x60xf32>
    %cst = arith.constant 2.500000e-01 : f32
    %11 = vector.broadcast %cst : f32 to vector<8x60xf32>
    %12 = arith.mulf %11, %10 : vector<8x60xf32>
    %13 = vector.extract_strided_slice %7 {offsets = [0, 0], sizes = [7, 60], strides = [1, 1]} : vector<7x64xf32> to vector<7x60xf32>
    %14 = vector.extract_strided_slice %7 {offsets = [0, 4], sizes = [7, 60], strides = [1, 1]} : vector<7x64xf32> to vector<7x60xf32>
    %15 = arith.addf %13, %14 : vector<7x60xf32>
    %cst_2 = arith.constant 2.500000e-01 : f32
    %16 = vector.broadcast %cst_2 : f32 to vector<7x60xf32>
    %17 = arith.mulf %16, %15 : vector<7x60xf32>
    %cst_3 = arith.constant 0.000000e+00 : f32
    %18 = vector.broadcast %cst_3 : f32 to vector<1x60xf32>
    %c0_4 = arith.constant 0 : index
    %c0_5 = arith.constant 0 : index
    %19 = vector.load %arg5[%c0_4, %c0_5] : memref<8x180xf32, #tpu.memory_space<vmem>>, vector<1x60xf32>
    tpu.vector_store %arg5[%c0_4, %c0_5], %18 {strides = array<i32>} : memref<8x180xf32, #tpu.memory_space<vmem>>, vector<1x60xf32>,
    %c1 = arith.constant 1 : index
    %c0_6 = arith.constant 0 : index
    %20 = vector.load %arg5[%c1, %c0_6] : memref<8x180xf32, #tpu.memory_space<vmem>>, vector<7x60xf32>
    tpu.vector_store %arg5[%c1, %c0_6], %17 {strides = array<i32>} : memref<8x180xf32, #tpu.memory_space<vmem>>, vector<7x60xf32>,
    %c0_7 = arith.constant 0 : index
    %c60 = arith.constant 60 : index
    %21 = vector.load %arg5[%c0_7, %c60] : memref<8x180xf32, #tpu.memory_space<vmem>>, vector<8x60xf32>
    tpu.vector_store %arg5[%c0_7, %c60], %12 {strides = array<i32>} : memref<8x180xf32, #tpu.memory_space<vmem>>, vector<8x60xf32>,
    %c0_8 = arith.constant 0 : index
    %c120 = arith.constant 120 : index
    %22 = vector.load %arg5[%c0_8, %c120] : memref<8x180xf32, #tpu.memory_space<vmem>>, vector<7x60xf32>
    tpu.vector_store %arg5[%c0_8, %c120], %17 {strides = array<i32>} : memref<8x180xf32, #tpu.memory_space<vmem>>, vector<7x60xf32>,
    %c7 = arith.constant 7 : index
    %c120_9 = arith.constant 120 : index
    %23 = vector.load %arg5[%c7, %c120_9] : memref<8x180xf32, #tpu.memory_space<vmem>>, vector<1x60xf32>
    tpu.vector_store %arg5[%c7, %c120_9], %18 {strides = array<i32>} : memref<8x180xf32, #tpu.memory_space<vmem>>, vector<1x60xf32>,
    %c0_10 = arith.constant 0 : index
    %c0_11 = arith.constant 0 : index
    %24 = vector.load %arg5[%c0_10, %c0_11] : memref<8x180xf32, #tpu.memory_space<vmem>>, vector<8x180xf32>
    %25 = arith.truncf %24 : vector<8x180xf32> to vector<8x180xbf16>
    %c0_12 = arith.constant 0 : index
    %c0_13 = arith.constant 0 : index
    %26 = vector.load %arg2[%c0_12, %c0_13] : memref<180x64xbf16, #tpu.memory_space<vmem>>, vector<180x64xbf16>
    %cst_14 = arith.constant dense<0.000000e+00> : vector<8x64xf32>
    %27 = tpu.matmul %25, %26, %cst_14 {dimension_numbers = #tpu.dot_dimension_numbers<[1], [0], [0], [1], [0, 0, 1, 1], [], []>} : vector<8x180xbf16>, vector<180x64xbf16>, vector<8x64xf32> -> vector<8x64xf32>
    %c0_15 = arith.constant 0 : index
    %c0_16 = arith.constant 0 : index
    %28 = vector.load %arg3[%c0_15, %c0_16] : memref<1x64xf32, #tpu.memory_space<vmem>>, vector<1x64xf32>
    %29 = vector.broadcast %28 : vector<1x64xf32> to vector<8x64xf32>
    %30 = arith.addf %27, %29 : vector<8x64xf32>
    %cst_17 = arith.constant 0.000000e+00 : f32
    %31 = vector.broadcast %cst_17 : f32 to vector<8x64xf32>
    %32 = arith.maximumf %30, %31 : vector<8x64xf32>
    %c0_18 = arith.constant 0 : index
    %c0_19 = arith.constant 0 : index
    %c0_20 = arith.constant 0 : index
    %33 = vector.load %arg4[%c0_18, %c0_19, %c0_20] : memref<1x8x64xf32, #tpu.memory_space<vmem>>, vector<1x8x64xf32>
    %34 = vector.shape_cast %33 : vector<1x8x64xf32> to vector<8x64xf32>
    %35 = vector.shape_cast %32 : vector<8x64xf32> to vector<1x8x64xf32>
    tpu.vector_store %arg4[%c0_18, %c0_19, %c0_20], %35 {strides = array<i32>} : memref<1x8x64xf32, #tpu.memory_space<vmem>>, vector<1x8x64xf32>,
    return
  }
  func.func @transform_0(%arg0: i32) -> (i32, i32, i32) {
    %c0_i32 = arith.constant 0 : i32
    %c0_i32_0 = arith.constant 0 : i32
    %c0_i32_1 = arith.constant 0 : i32
    return %arg0, %c0_i32, %c0_i32_0 : i32, i32, i32
  }
  func.func @transform_1(%arg0: i32) -> (i32, i32) {
    %c0_i32 = arith.constant 0 : i32
    %c0_i32_0 = arith.constant 0 : i32
    %c0_i32_1 = arith.constant 0 : i32
    return %c0_i32, %c0_i32_0 : i32, i32
  }
  func.func @transform_2(%arg0: i32) -> (i32, i32) {
    %c0_i32 = arith.constant 0 : i32
    %c0_i32_0 = arith.constant 0 : i32
    %c0_i32_1 = arith.constant 0 : i32
    return %c0_i32, %c0_i32_0 : i32, i32
  }
  func.func @transform_3(%arg0: i32) -> (i32, i32, i32) {
    %c0_i32 = arith.constant 0 : i32
    %c0_i32_0 = arith.constant 0 : i32
    %c0_i32_1 = arith.constant 0 : i32
    return %arg0, %c0_i32, %c0_i32_0 : i32, i32, i32
  }
}

</mosaic_0001>

<llo_original>
// kernel: tpu_custom_call.1
$region0: #{tpu_custom_call.1}
  #allocation0 [shape = 'u32[]', space=smem, size = 0x4, offset = 0x4, fixed_abs, tag = 'smem constant byte address 0x4 - core index']
  #allocation1 [shape = 'u32[144,128]{1,0:T(1,128)}', space=vmem, size = 0x12000, scoped, tag = 'internal scratch']
  #allocation2 [shape = 'f32[8,180]{1,0:T(8,128)}', space=vmem, size = 0x2000, scoped, tag = 'scratch operand']
  %s0 = inlined_call_operand.vmem [shape: f32[2,8,128], index: 0, kind: input, shape index: {}]
  %s1 = inlined_call_operand.vmem [shape: bf16[180,64], index: 1, kind: input, shape index: {}]
  %s2 = inlined_call_operand.vmem [shape: f32[1,64], index: 2, kind: input, shape index: {}]
  %s3 = inlined_call_operand.hbm [shape: f32[2,8,64], index: 3, kind: output, shape index: {}]
  %s4 = sld [smem:[#allocation0]]
  $region45: #{tpu_custom_call.1} parent=0
    _
  %s6 = ssub.s32 1, %s4
  %s7 = scalar_select 0, %s6, %s4
  $region1: #{tpu_custom_call.1} parent=0
    #allocation3 [shape = 'u8[8192]{0}', space=vmem, size = 0x2000, scoped, tag = 'output window, operand 0']
    #allocation4 [shape = 's32[2]{0}', space=sflag, size = 0x8, scoped, tag = 'scoped memory for tpu_custom_call.1']
    %8 = vsyncpa [#allocation4], 0
    %s9 = scalar_lea.sflag [#allocation4], 1
    %10 = vsyncpa %s9, 0
    loop: start=0, step=1, limit=4
    $region2: #{tpu_custom_call.1} parent=1 // loop_pre_header
      _
    $region3: #{tpu_custom_call.1} parent=1 // loop_header
      %s12 = sphi 0, %s16
      %p13 = scmp.ge.s32.totalorder %s12, 4
      %s22 = sphi 0, %s24
      %s25 = sphi 0, %s22
      %s26 = sphi 0, %s25
      %s42 = sphi 0, %s26
      %s46 = sphi 0, %s46
      %s48 = sphi 0, %s46
      %s49 = sphi 0, %s48
      %s63 = sphi 0, %s49
      %s67 = sphi 0, %s67
      %s69 = sphi 0, %s67
      %s70 = sphi 0, %s69
      %s84 = sphi 0, %s70
      %s90 = sphi 0, %s92
      %s93 = sphi 0, %s90
      %s94 = sphi 0, %s93
      %s110 = sphi 0, %s94
    $region4: #{tpu_custom_call.1} parent=1 // loop_header_branch
      %15 = sbr.rel (%p13) target = $region8
    $region5: #{tpu_custom_call.1} parent=1 // loop_body
      %s17 = ssub.s32 %s12, 1
      %s18 = ssub.s32 %s12, 2
      %s19 = sadd.s32 %s12, 1
      %s20 = ssub.s32 %s12, %s19
      %p21 = scmp.eq.s32.totalorder %s20, 0
      %s23 = sadd.s32 %s22, 1
      %s24 = scalar_select %p21, %s22, %s23
      %p27 = pneg %p21
      %p28 = scmp.eq.s32.totalorder %s12, 1
      %p29 = por %p27, %p28
      %p30 = scmp.ne.s32.totalorder %s22, %s25
      %p31 = scmp.eq.s32.totalorder %s12, 0
      %p32 = por %p30, %p31
      %p33 = scmp.ne.s32.totalorder %s22, %s25
      %p34 = scmp.eq.s32.totalorder %s17, 1
      %p35 = por %p33, %p34
      %p36 = scmp.ne.s32.totalorder %s25, %s26
      %p37 = scmp.eq.s32.totalorder %s17, 0
      %p38 = por %p36, %p37
      %p39 = scmp.ne.s32.totalorder %s25, %s26
      %p40 = scmp.eq.s32.totalorder %s18, 1
      %p41 = por %p39, %p40
      %p43 = scmp.ne.s32.totalorder %s26, %s42
      %p44 = scmp.eq.s32.totalorder %s18, 0
      %p45 = por %p43, %p44
      %s47 = sadd.s32 %s46, 1
      %p50 = scmp.eq.s32.totalorder %s12, 1
      %p51 = scmp.ne.s32.totalorder %s46, %s48
      %p52 = scmp.eq.s32.totalorder %s12, 0
      %p53 = por %p51, %p52
      %p54 = scmp.ne.s32.totalorder %s46, %s48
      %p55 = scmp.eq.s32.totalorder %s17, 1
      %p56 = por %p54, %p55
      %p57 = scmp.ne.s32.totalorder %s48, %s49
      %p58 = scmp.eq.s32.totalorder %s17, 0
      %p59 = por %p57, %p58
      %p60 = scmp.ne.s32.totalorder %s48, %s49
      %p61 = scmp.eq.s32.totalorder %s18, 1
      %p62 = por %p60, %p61
      %p64 = scmp.ne.s32.totalorder %s49, %s63
      %p65 = scmp.eq.s32.totalorder %s18, 0
      %p66 = por %p64, %p65
      %s68 = sadd.s32 %s67, 1
      %p71 = scmp.eq.s32.totalorder %s12, 1
      %p72 = scmp.ne.s32.totalorder %s67, %s69
      %p73 = scmp.eq.s32.totalorder %s12, 0
      %p74 = por %p72, %p73
      %p75 = scmp.ne.s32.totalorder %s67, %s69
      %p76 = scmp.eq.s32.totalorder %s17, 1
      %p77 = por %p75, %p76
      %p78 = scmp.ne.s32.totalorder %s69, %s70
      %p79 = scmp.eq.s32.totalorder %s17, 0
      %p80 = por %p78, %p79
      %p81 = scmp.ne.s32.totalorder %s69, %s70
      %p82 = scmp.eq.s32.totalorder %s18, 1
      %p83 = por %p81, %p82
      %p85 = scmp.ne.s32.totalorder %s70, %s84
      %p86 = scmp.eq.s32.totalorder %s18, 0
      %p87 = por %p85, %p86
      %s88 = ssub.s32 %s12, %s19
      %p89 = scmp.eq.s32.totalorder %s88, 0
      %s91 = sadd.s32 %s90, 1
      %s92 = scalar_select %p89, %s90, %s91
      %p95 = pneg %p89
      %p96 = scmp.eq.s32.totalorder %s12, 1
      %p97 = por %p95, %p96
      %p98 = scmp.ne.s32.totalorder %s90, %s93
      %p99 = scmp.eq.s32.totalorder %s12, 0
      %p100 = por %p98, %p99
      %p101 = scmp.ne.s32.totalorder %s90, %s93
      %p102 = scmp.eq.s32.totalorder %s17, 1
      %p103 = por %p101, %p102
      %p104 = scmp.ne.s32.totalorder %s93, %s94
      %p105 = scmp.eq.s32.totalorder %s17, 0
      %p106 = por %p104, %p105
      %p107 = scmp.ne.s32.totalorder %s93, %s94
      %p108 = scmp.eq.s32.totalorder %s18, 1
      %p109 = por %p107, %p108
      %p111 = scmp.ne.s32.totalorder %s94, %s110
      %p112 = scmp.eq.s32.totalorder %s18, 0
      %p113 = por %p111, %p112
      %p114 = scmp.le.s32.totalorder 1, %s12
      %p115 = scmp.lt.s32.totalorder %s12, 3
      %p116 = pnand %p114, %p115
      %p117 = pneg %p116
      // Predicated region
      $region9: #{tpu_custom_call.1} parent=5 // pred_check
        _
      $region10: #{tpu_custom_call.1} parent=5 // pred_check_branch
        %119 = sbr.rel (%p116) target = $region12
      $region11: #{tpu_custom_call.1} parent=5 // pred_region
        %s120 = ssub.s32 %s12, 1
        // Predicated region
        $region13: #{tpu_custom_call.1} parent=11 // pred_check
          %p121 = pneg %p59
        $region14: #{tpu_custom_call.1} parent=11 // pred_check_branch
          %123 = sbr.rel (%p121) target = $region16
        $region15: #{tpu_custom_call.1} parent=11 // pred_region
          _
        $region16: #{tpu_custom_call.1} parent=11 // pred_fallthru
          _
        // Predicated region
        $region17: #{tpu_custom_call.1} parent=11 // pred_check
          %p124 = pneg %p80
        $region18: #{tpu_custom_call.1} parent=11 // pred_check_branch
          %126 = sbr.rel (%p124) target = $region20
        $region19: #{tpu_custom_call.1} parent=11 // pred_region
          _
        $region20: #{tpu_custom_call.1} parent=11 // pred_fallthru
          _
      $region12: #{tpu_custom_call.1} parent=5 // pred_fallthru
        _
      %p127 = scmp.lt.s32.totalorder %s12, 2
      // Predicated region
      $region21: #{tpu_custom_call.1} parent=5 // pred_check
        %p128 = pneg %p127
      $region22: #{tpu_custom_call.1} parent=5 // pred_check_branch
        %130 = sbr.rel (%p128) target = $region24
      $region23: #{tpu_custom_call.1} parent=5 // pred_region
        // Predicated region
        $region25: #{tpu_custom_call.1} parent=23 // pred_check
          %p131 = pneg %p32
        $region26: #{tpu_custom_call.1} parent=23 // pred_check_branch
          %133 = sbr.rel (%p131) target = $region28
        $region27: #{tpu_custom_call.1} parent=23 // pred_region
          %p134 = scmp.lt.s32.totalorder %s12, 1
          %s135 = scalar_select %p134, %s12, 1
          %s136 = smul.addr %s135, 8
          %s137 = scalar_lea.vmem %s0, %s136
        $region28: #{tpu_custom_call.1} parent=23 // pred_fallthru
          _
      $region24: #{tpu_custom_call.1} parent=5 // pred_fallthru
        _
      %p138 = scmp.le.s32.totalorder 1, %s12
      %p139 = scmp.lt.s32.totalorder %s12, 3
      %p140 = pnand %p138, %p139
      %p141 = pneg %p140
      // Predicated region
      $region29: #{tpu_custom_call.1} parent=5 // pred_check
        _
      $region30: #{tpu_custom_call.1} parent=5 // pred_check_branch
        %143 = sbr.rel (%p140) target = $region32
      $region31: #{tpu_custom_call.1} parent=5 // pred_region
        %s144 = ssub.s32 %s12, 1
        %p145 = scmp.lt.s32.totalorder %s17, 1
        %s146 = scalar_select %p145, %s17, 1
        %s147 = smul.addr %s146, 8
        %s148 = scalar_lea.vmem %s0, %s147
        %p149 = pneg %p38
        %p150 = pneg %p35
        %p151 = pneg %p59
        %p152 = pneg %p56
        %p153 = pneg %p80
        %p154 = pneg %p77
        %p155 = pneg %p106
        %p156 = pneg %p103
        %s157 = sand.u32 %s93, 1
        %s158 = scalar_lea.sflag [#allocation4], %s157
        %s159 = sand.u32 %s93, 1
        %s160 = smul.addr %s159, 8
        %s161 = scalar_lea.vmem [#allocation3], %s160
        %p162 = scmp.lt.s32.totalorder %s17, 1
        %s163 = scalar_select %p162, %s17, 1
        %s164 = smul.addr %s163, 8
        %s165 = scalar_lea.vmem %s0, %s164
        %v167 = vld [vmem:[%s165] sm:$0xff]
        %169 = vrot.lane.b32.xlu0 %v167, 64
        %v170 = vpop.permute.xlu0 %169
        %v172 = vadd.f32 %v167, %v170
        %v173 = vrot.slane %v167, 1
        %174 = vrot.lane.b32.xlu0 %v173, 64
        %v175 = vpop.permute.xlu0 %174
        %v177 = vadd.f32 %v167, %v175
        %179 = vrot.lane.b32.xlu0 %v172, 124
        %v180 = vpop.permute.xlu0 %179
        %v182 = vadd.f32 %v172, %v180
        %v183 = vmul.f32 %v182, 0.25
        %185 = vrot.lane.b32.xlu0 %v177, 124
        %v186 = vpop.permute.xlu0 %185
        %v188 = vadd.f32 %v177, %v186
        %v189 = vmul.f32 %v188, 0.25
        %vm190 = vcmask 483328
        %191 = vst.msk [vmem:[#allocation2] sm:$0x1] %vm190, 0.0
        %v193 = vrot.slane %v189, 7
        %194 = vrot.lane.b32.xlu0 %v193, 64
        %v195 = vpop.permute.xlu0 %194
        %vm197 = vcmask 490497
        %198 = vst.msk [vmem:[#allocation2] sm:$0xfe] %vm197, %v195
        %200 = vrot.lane.b32.xlu0 %v183, 60
        %v201 = vpop.permute.xlu0 %200
        %vm203 = vcmask 982496
        %204 = vst.msk [vmem:[#allocation2] sm:$0xff] %vm203, %v201
        %205 = vrot.lane.b32.xlu0 %v189, 56
        %v206 = vpop.permute.xlu0 %205
        %vm208 = vcmask 1047488
        %209 = vst.msk [vmem:[#allocation2] sm:$0x7f] %vm208, %v206
        %vm210 = vcmask 423936
        %211 = vst.msk [vmem:[#allocation2 + $0x8] sm:$0x7f] %vm210, %v206
        %vm212 = vcmask 1041344
        %213 = vst.msk [vmem:[#allocation2 + $0x7] sm:$0x1] %vm212, 0.0
        %vm214 = vcmask 417792
        %215 = vst.msk [vmem:[#allocation2 + $0xf] sm:$0x1] %vm214, 0.0
        %v216 = vld [vmem:[#allocation2] sm:$0xff]
        %v217 = vld [vmem:[#allocation2 + $0x8] sm:$0xff]
        %v218 = vpack.c.bf16 %v216, %v216
        %v219 = vpack.c.bf16 %v217, %v217
        %v220 = vld [vmem:[%s1] sm:$0xf]
        %v221 = vld [vmem:[%s1 + $0x4] sm:$0xf]
        %v222 = vld [vmem:[%s1 + $0x8] sm:$0xf]
        %v223 = vld [vmem:[%s1 + $0xc] sm:$0xf]
        %v224 = vld [vmem:[%s1 + $0x10] sm:$0xf]
        %v225 = vld [vmem:[%s1 + $0x14] sm:$0xf]
        %v226 = vld [vmem:[%s1 + $0x18] sm:$0xf]
        %v227 = vld [vmem:[%s1 + $0x1c] sm:$0xf]
        %v228 = vld [vmem:[%s1 + $0x20] sm:$0xf]
        %v229 = vld [vmem:[%s1 + $0x24] sm:$0xf]
        %v230 = vld [vmem:[%s1 + $0x28] sm:$0xf]
        %v231 = vld [vmem:[%s1 + $0x2c] sm:$0xf]
        %v232 = vld [vmem:[%s1 + $0x30] sm:$0xf]
        %v233 = vld [vmem:[%s1 + $0x34] sm:$0xf]
        %v234 = vld [vmem:[%s1 + $0x38] sm:$0xf]
        %v235 = vld [vmem:[%s1 + $0x3c] sm:$0xf]
        %v236 = vld [vmem:[%s1 + $0x40] sm:$0xf]
        %v237 = vld [vmem:[%s1 + $0x44] sm:$0xf]
        %v238 = vld [vmem:[%s1 + $0x48] sm:$0xf]
        %v239 = vld [vmem:[%s1 + $0x4c] sm:$0xf]
        %v240 = vld [vmem:[%s1 + $0x50] sm:$0xf]
        %v241 = vld [vmem:[%s1 + $0x54] sm:$0xf]
        %v242 = vld [vmem:[%s1 + $0x58] sm:$0x3]
        %v243 = vld [vmem:[%s2] sm:$0x1]
        %v245 = vlaneseq
        %v246 = vshrl.u32 %v245, 7
        %v247 = vsub.s32 0, %v246
        %v248 = vrot.slane %v243, %v247
        %v273 = vunpack.c.l.b16 %v220
        %v274 = vunpack.c.l.b16 %v221
        %v275 = vunpack.c.l.b16 %v222
        %v276 = vunpack.c.l.b16 %v223
        %v277 = vunpack.c.l.b16 %v224
        %v278 = vunpack.c.l.b16 %v225
        %v279 = vunpack.c.l.b16 %v226
        %v280 = vunpack.c.l.b16 %v227
        %v281 = vunpack.c.l.b16 %v228
        %v282 = vunpack.c.l.b16 %v229
        %v283 = vunpack.c.l.b16 %v230
        %v284 = vunpack.c.l.b16 %v231
        %v285 = vunpack.c.l.b16 %v232
        %v286 = vunpack.c.l.b16 %v233
        %v287 = vunpack.c.l.b16 %v234
        %v288 = vunpack.c.l.b16 %v235
        %v289 = vunpack.c.l.b16 %v236
        %v290 = vunpack.c.l.b16 %v237
        %v291 = vunpack.c.l.b16 %v238
        %v292 = vunpack.c.l.b16 %v239
        %v293 = vunpack.c.l.b16 %v240
        %v294 = vunpack.c.l.b16 %v241
        %v295 = vunpack.c.l.b16 %v242
        %v296 = vpack.c.b16 %v274, %v273
        %v297 = vpack.c.b16 %v276, %v275
        %v298 = vpack.c.b16 %v278, %v277
        %v299 = vpack.c.b16 %v280, %v279
        %v300 = vpack.c.b16 %v282, %v281
        %v301 = vpack.c.b16 %v284, %v283
        %v302 = vpack.c.b16 %v286, %v285
        %v303 = vpack.c.b16 %v288, %v287
        %v304 = vpack.c.b16 %v290, %v289
        %v305 = vpack.c.b16 %v292, %v291
        %v306 = vpack.c.b16 %v294, %v293
        %v307 = vpack.c.b16 %v295, %v295
        %vm319 = vcmask 424960
        %v321 = vsel %vm319, %v219, 0
        %vm323 = vcmask 1041408
        %v325 = vsel %vm323, %v307, 0
        %327 = vmatprep.subr.bf16.mxu0 0
        %328 = vmatpush1.bf16.msra.mxu0 %v303
        %329 = vmatprep.subr.bf16.mxu0 0
        %330 = vmatpush1.bf16.msra.mxu0 %v302
        %331 = vmatprep.subr.bf16.mxu0 0
        %332 = vmatpush1.bf16.msra.mxu0 %v301
        %333 = vmatprep.subr.bf16.mxu0 0
        %334 = vmatpush1.bf16.msra.mxu0 %v300
        %335 = vmatprep.subr.bf16.mxu0 0
        %336 = vmatpush1.bf16.msra.mxu0 %v299
        %337 = vmatprep.subr.bf16.mxu0 0
        %338 = vmatpush1.bf16.msra.mxu0 %v298
        %339 = vmatprep.subr.bf16.mxu0 0
        %340 = vmatpush1.bf16.msra.mxu0 %v297
        %341 = vmatprep.subr.bf16.mxu0 0
        %342 = vmatpush1.bf16.msra.mxu0 %v296
        %343 = vmatprep.subr.bf16.mxu0 0
        %344 = vmatpush2.bf16.msra.mxu0 0
        %345 = vmatprep.subr.bf16.mxu0 0
        %346 = vmatpush2.bf16.msra.mxu0 0
        %347 = vmatprep.subr.bf16.mxu0 0
        %348 = vmatpush2.bf16.msra.mxu0 0
        %349 = vmatprep.subr.bf16.mxu0 0
        %350 = vmatpush2.bf16.msra.mxu0 0
        %351 = vmatprep.subr.bf16.mxu0 0
        %352 = vmatpush2.bf16.msra.mxu0 %v325
        %353 = vmatprep.subr.bf16.mxu0 0
        %354 = vmatpush2.bf16.msra.mxu0 %v306
        %355 = vmatprep.subr.bf16.mxu0 0
        %356 = vmatpush2.bf16.msra.mxu0 %v305
        %357 = vmatprep.subr.bf16.mxu0 0
        %358 = vmatpush2.bf16.msra.mxu0 %v304
        %359 = vmatprep.mubr.bf16.mxu0 %v321
        %360 = vmatmul.mubr.bf16.gmra.mxu0 %v218
        %v361 = vpop.f32.mrf.mxu0
        %v362 = vadd.f32 %v248, %v361
        %v363 = vpop.f32.mrf.mxu0
        %v364 = vpop.f32.mrf.mxu0
        %v365 = vpop.f32.mrf.mxu0
        %366 = vdwg.mxu0
        %v367 = vmax.f32 %v362, 0.0
        %vm368 = vcmask 523264
        %369 = vst.msk [vmem:[%s161] sm:$0xff] %vm368, %v367
        %s370 = sand.u32 %s93, 1
        %s371 = scalar_lea.sflag [#allocation4], %s370
        %s372 = sand.u32 %s93, 1
        %s373 = smul.addr %s372, 8
        %s374 = scalar_lea.vmem [#allocation3], %s373
        // Predicated region
        $region33: #{tpu_custom_call.1} parent=31 // pred_check
          %p375 = pneg %p103
        $region34: #{tpu_custom_call.1} parent=31 // pred_check_branch
          %377 = sbr.rel (%p375) target = $region36
        $region35: #{tpu_custom_call.1} parent=31 // pred_region
          %s379 = ssub.s32 128, 128
          %380 = vsyncadd %s371, %s379
          %s381 = smul.addr %s17, 128
          %s382 = scalar_lea.hbm %s3, %s381
          %s384 = sshll.u32 %s374, 4
          %s385 = int_to_ptr.vmem [resolvable:$true] %s384
          %387 = dma.vmem_to_hbm [thread:$0]  %s385, 128, %s382, %s371
        $region36: #{tpu_custom_call.1} parent=31 // pred_fallthru
          _
      $region32: #{tpu_custom_call.1} parent=5 // pred_fallthru
        _
      %p388 = scmp.le.s32.totalorder 2, %s12
      // Predicated region
      $region37: #{tpu_custom_call.1} parent=5 // pred_check
        %p389 = pneg %p388
      $region38: #{tpu_custom_call.1} parent=5 // pred_check_branch
        %391 = sbr.rel (%p389) target = $region40
      $region39: #{tpu_custom_call.1} parent=5 // pred_region
        %s392 = ssub.s32 %s12, 2
        // Predicated region
        $region41: #{tpu_custom_call.1} parent=39 // pred_check
          %p393 = pneg %p109
        $region42: #{tpu_custom_call.1} parent=39 // pred_check_branch
          %395 = sbr.rel (%p393) target = $region44
        $region43: #{tpu_custom_call.1} parent=39 // pred_region
          %s396 = sand.u32 %s94, 1
          %s397 = scalar_lea.sflag [#allocation4], %s396
          %s398 = sand.u32 %s94, 1
          %s399 = smul.addr %s398, 8
          %s400 = scalar_lea.vmem [#allocation3], %s399
          %401 = dma.done %s397, 128
        $region44: #{tpu_custom_call.1} parent=39 // pred_fallthru
          _
      $region40: #{tpu_custom_call.1} parent=5 // pred_fallthru
        _
    $region6: #{tpu_custom_call.1} parent=1 // loop_footer
      %s16 = sadd.s32 1, %s12
    $region7: #{tpu_custom_call.1} parent=1 // loop_footer_branch
      %11 = sbr.rel target = $region3
    $region8: #{tpu_custom_call.1} parent=1 // loop_exit
      _
    %402 = vsyncpa [#allocation4], 1
    %s403 = scalar_lea.sflag [#allocation4], 1
    %404 = vsyncpa %s403, 1

</llo_original>
